<compile_context>
chip_gen: v7x
topology: tpu7x:2x2x1
jax: 0.10.0
libtpu: 0.0.40
codegen_flags: <defaults>
</compile_context>

<pallas_src>
import jax
import jax.numpy as jnp
from jax import lax
from jax.experimental import pallas as pl
from jax.experimental.pallas import tpu as pltpu


_SUBLANES = 8          # f32 sublane packing
_LANES = 128           # vreg lane width
_MXU = 256             # v6e/v7x MXU tile width

_RESIDENT_VMEM_BUDGET = 44 << 20   # resident-weights path must fit under this
_VMEM_CAP = 60 << 20               # stay below v7x's 64 MiB physical VMEM


def _round_up(x, m):
    return ((x + m - 1) // m) * m


def _pad_dim(d):
    """Lane-dense feature padding: 128 for small dims, else multiples of 256."""
    if d <= _LANES:
        return _LANES
    return _round_up(d, _MXU)


def _choose_row_tile(n, max_tile=512):
    """Row tile (multiple of 8) and padded row count.

    No forced splitting for small N (splitting only re-streams weights and adds
    per-step overhead on single-TC v5e/v6e); large N gets tiles of up to
    `max_tile` rows so v6e/v7x stay MXU-bound even on the streaming path.
    """
    n8 = _round_up(max(n, 1), _SUBLANES)
    tm = min(n8, max_tile)
    return tm, _round_up(n8, tm)


def _vmem_limit(bytes_needed):
    return int(min(max(2 * bytes_needed, 32 << 20), _VMEM_CAP))


# ------------------------------- kernels ------------------------------------


def _fc1_kernel(x_ref, w0_ref, o_ref):
    # numRes == 0: out = relu(x @ W0)
    y = jnp.dot(x_ref[...], w0_ref[...], preferred_element_type=jnp.float32)
    o_ref[...] = jnp.maximum(y, 0.0).astype(o_ref.dtype)


def _resident_kernel(x_ref, w0_ref, w1s_ref, w2s_ref, o_ref):
    # Whole weight stack resident in VMEM; loop residual layers in-kernel.
    num_res = w1s_ref.shape[0]
    wdt = w0_ref.dtype

    y = jnp.maximum(
        jnp.dot(x_ref[...], w0_ref[...], preferred_element_type=jnp.float32),
        0.0)

    def body(l, y):
        h = jnp.maximum(
            jnp.dot(y.astype(wdt), w1s_ref[l],
                    preferred_element_type=jnp.float32), 0.0)
        t = jnp.maximum(
            jnp.dot(h.astype(wdt), w2s_ref[l],
                    preferred_element_type=jnp.float32), 0.0)
        return y + t

    y = lax.fori_loop(0, num_res, body, y, unroll=(num_res <= 8))
    o_ref[...] = y.astype(o_ref.dtype)


def _stream_kernel(x_ref, w0_ref, w1_ref, w2_ref, o_ref, acc_ref):
    # grid = (row_tiles, 1 + numRes); layer axis innermost ("arbitrary").
    layer = pl.program_id(1)

    @pl.when(layer == 0)
    def _fc1():
        y = jnp.dot(x_ref[...], w0_ref[...],
                    preferred_element_type=jnp.float32)
        acc_ref[...] = jnp.maximum(y, 0.0)

    @pl.when(layer > 0)
    def _res_block():
        a = acc_ref[...]
        h = jnp.maximum(jnp.dot(a.astype(w1_ref.dtype), w1_ref[...],
                                preferred_element_type=jnp.float32), 0.0)
        t = jnp.maximum(jnp.dot(h.astype(w2_ref.dtype), w2_ref[...],
                                preferred_element_type=jnp.float32), 0.0)
        acc_ref[...] = a + t

    @pl.when(layer == pl.num_programs(1) - 1)
    def _writeback():
        o_ref[...] = acc_ref[...].astype(o_ref.dtype)


# ------------------------------- wrapper -------------------------------------


def dim_reduction_forward(x, w0_p, w1s_p, w2s_p, *, m_dim, max_row_tile=512,
                          force_stream=False):
    """x: (N, Cin).  w0_p: (Cin_p, D_p).  w1s_p/w2s_p: (numRes, D_p, D_p) or None."""
    n, cin = x.shape
    cin_p, d_p = w0_p.shape
    num_res = 0 if w1s_p is None else int(w1s_p.shape[0])
    wdtype = w0_p.dtype
    out_dtype = x.dtype
    wbytes = jnp.dtype(wdtype).itemsize
    obytes = jnp.dtype(out_dtype).itemsize

    tm, n_pad = _choose_row_tile(n, max_row_tile)
    # bf16-cast + pad in the wrapper: halves x DMA / VMEM vs f32 in-kernel cast.
    x_p = jnp.pad(x.astype(wdtype), ((0, n_pad - n), (0, cin_p - cin)))
    grid_rows = n_pad // tm

    if num_res == 0:
        vmem = 2 * (tm * cin_p * wbytes + cin_p * d_p * wbytes
                    + tm * d_p * obytes)
        out = pl.pallas_call(
            _fc1_kernel,
            out_shape=jax.ShapeDtypeStruct((n_pad, d_p), out_dtype),
            grid=(grid_rows,),
            in_specs=[pl.BlockSpec((tm, cin_p), lambda i: (i, 0)),
                      pl.BlockSpec((cin_p, d_p), lambda i: (0, 0))],
            out_specs=pl.BlockSpec((tm, d_p), lambda i: (i, 0)),
            compiler_params=pltpu.CompilerParams(
                dimension_semantics=("parallel",),
                vmem_limit_bytes=_vmem_limit(vmem)),
        )(x_p, w0_p)
        return out[:n, :m_dim]

    # Resident-weights estimate: double-buffered blocks + f32 intermediates.
    resident_vmem = (2 * tm * cin_p * wbytes
                     + 2 * cin_p * d_p * wbytes
                     + 2 * 2 * num_res * d_p * d_p * wbytes
                     + 2 * tm * d_p * obytes
                     + 3 * tm * d_p * 4)

    if (not force_stream) and resident_vmem <= _RESIDENT_VMEM_BUDGET:
        out = pl.pallas_call(
            _resident_kernel,
            out_shape=jax.ShapeDtypeStruct((n_pad, d_p), out_dtype),
            grid=(grid_rows,),
            in_specs=[
                pl.BlockSpec((tm, cin_p), lambda i: (i, 0)),          # x tile
                pl.BlockSpec((cin_p, d_p), lambda i: (0, 0)),         # W0
                pl.BlockSpec((num_res, d_p, d_p), lambda i: (0, 0, 0)),  # W1 stack
                pl.BlockSpec((num_res, d_p, d_p), lambda i: (0, 0, 0)),  # W2 stack
            ],
            out_specs=pl.BlockSpec((tm, d_p), lambda i: (i, 0)),
            compiler_params=pltpu.CompilerParams(
                dimension_semantics=("parallel",),
                vmem_limit_bytes=_vmem_limit(resident_vmem)),
        )(x_p, w0_p, w1s_p, w2s_p)
        return out[:n, :m_dim]

    # Streaming fallback (very large m_dim / numRes).  Layer index clamped so
    # layer 0 (fc1) prefetches the real W1[0]/W2[0] that layer 1 reuses.
    # TODO(synk): for d_p >= ~2K on v7x (64 MiB VMEM) add a K-tiling grid axis
    # for the (D_p, D_p) weights and single-buffer the constant W0 / x blocks
    # (pipeline_mode=pl.Buffered(1)); consider pl.Buffered(3) on W1/W2 for v5e.
    stream_vmem = (2 * tm * cin_p * wbytes
                   + 2 * cin_p * d_p * wbytes
                   + 2 * 2 * d_p * d_p * wbytes
                   + 2 * tm * d_p * obytes
                   + tm * d_p * 4)
    out = pl.pallas_call(
        _stream_kernel,
        out_shape=jax.ShapeDtypeStruct((n_pad, d_p), out_dtype),
        grid=(grid_rows, num_res + 1),
        in_specs=[
            pl.BlockSpec((tm, cin_p), lambda i, l: (i, 0)),
            pl.BlockSpec((cin_p, d_p), lambda i, l: (0, 0)),
            pl.BlockSpec((None, d_p, d_p),
                         lambda i, l: (jnp.maximum(l - 1, 0), 0, 0)),
            pl.BlockSpec((None, d_p, d_p),
                         lambda i, l: (jnp.maximum(l - 1, 0), 0, 0)),
        ],
        out_specs=pl.BlockSpec((tm, d_p), lambda i, l: (i, 0)),
        scratch_shapes=[pltpu.VMEM((tm, d_p), jnp.float32)],
        compiler_params=pltpu.CompilerParams(
            dimension_semantics=("parallel", "arbitrary"),
            vmem_limit_bytes=_vmem_limit(stream_vmem)),
    )(x_p, w0_p, w1s_p, w2s_p)
    return out[:n, :m_dim]


# ------------------------------- module -------------------------------------


class DimReductionPallas:
    """JAX/Pallas port of DimReduction(n_channels, m_dim, numLayer_Res)."""

    def __init__(self, n_channels, m_dim=512, numLayer_Res=0, *, key=None,
                 param_dtype=jnp.bfloat16):
        if key is None:
            key = jax.random.PRNGKey(0)
        self.n_channels = n_channels
        self.m_dim = m_dim
        self.numRes = numLayer_Res
        # NOTE: weights are held in bf16 (f32 MXU accumulation).  The pure-JAX
        # reference mirrors this; confirm bf16 weights are acceptable vs the
        # f32 PyTorch model.
        self.param_dtype = param_dtype

        # PyTorch-Linear-like init U[-1/sqrt(fan_in), 1/sqrt(fan_in)],
        # stored pre-transposed to (in, out), bias-free (matches the module).
        def linear_w(k, fan_in, fan_out):
            bound = 1.0 / (float(fan_in) ** 0.5)
            w = jax.random.uniform(k, (fan_in, fan_out), jnp.float32,
                                   minval=-bound, maxval=bound)
            return w.astype(param_dtype)

        keys = jax.random.split(key, 1 + 2 * max(numLayer_Res, 1))
        self.fc1_w_t = linear_w(keys[0], n_channels, m_dim)
        self.res_ws = []
        for ii in range(numLayer_Res):
            w1 = linear_w(keys[1 + 2 * ii], m_dim, m_dim)
            w2 = linear_w(keys[2 + 2 * ii], m_dim, m_dim)
            self.res_ws.append((w1, w2))

        # Lane-dense padded + layer-stacked copies for the fused kernel
        # (no dummy fc1 slot; stacks are exactly (numRes, D_p, D_p)).
        cin_p = _pad_dim(n_channels)
        d_p = _pad_dim(m_dim)
        w0_p = jnp.zeros((cin_p, d_p), param_dtype)
        w0_p = w0_p.at[:n_channels, :m_dim].set(self.fc1_w_t)
        if numLayer_Res > 0:
            w1s = jnp.zeros((numLayer_Res, d_p, d_p), param_dtype)
            w2s = jnp.zeros((numLayer_Res, d_p, d_p), param_dtype)
            for ii, (w1, w2) in enumerate(self.res_ws):
                w1s = w1s.at[ii, :m_dim, :m_dim].set(w1)
                w2s = w2s.at[ii, :m_dim, :m_dim].set(w2)
        else:
            w1s = w2s = None
        self._w0_p, self._w1s_p, self._w2s_p = w0_p, w1s, w2s

    def __call__(self, x, *, force_stream=False):
        assert x.shape[-1] == self.n_channels
        return dim_reduction_forward(x, self._w0_p, self._w1s_p, self._w2s_p,
                                     m_dim=self.m_dim,
                                     force_stream=force_stream)

    # pure-JAX reference mirroring the kernel's dtype flow (bf16 matmul inputs,
    # f32 accumulation, f32 ReLU / residual add).
    def reference(self, x):
        pd = self.param_dtype
        y = jnp.maximum(
            jnp.dot(x.astype(pd), self.fc1_w_t,
                    preferred_element_type=jnp.float32), 0.0)
        for (w1, w2) in self.res_ws:
            h = jnp.maximum(jnp.dot(y.astype(pd), w1,
                                    preferred_element_type=jnp.float32), 0.0)
            t = jnp.maximum(jnp.dot(h.astype(pd), w2,
                                    preferred_element_type=jnp.float32), 0.0)
            y = y + t
        return y.astype(x.dtype)


# ------------------------------- main ---------------------------------------

if __name__ == "__main__":
    key = jax.random.PRNGKey(0)
    k_x, k_p = jax.random.split(key)

    # Small shapes consistent with the module's forward: x is (N, n_channels).
    N, n_channels, m_dim, num_res = 16, 32, 64, 2
    x = jax.random.normal(k_x, (N, n_channels), jnp.float32)

    # Residual blocks, resident-weights path.
    model = DimReductionPallas(n_channels, m_dim, numLayer_Res=num_res, key=k_p)
    out = jax.block_until_ready(model(x))
    ref = model.reference(x)
    assert out.shape == (N, m_dim)
    err = float(jnp.max(jnp.abs(out - ref)))
    assert jnp.allclose(out, ref, atol=5e-3, rtol=5e-3), f"max abs err {err}"

    # Same weights, streaming fallback path (clamped layer index_map).
    out_s = jax.block_until_ready(model(x, force_stream=True))
    err_s = float(jnp.max(jnp.abs(out_s - ref)))
    assert jnp.allclose(out_s, ref, atol=5e-3, rtol=5e-3), f"max abs err {err_s}"

    # numLayer_Res = 0 path (fc1 + ReLU only).
    model0 = DimReductionPallas(n_channels, m_dim, numLayer_Res=0, key=k_p)
    out0 = jax.block_until_ready(model0(x))
    ref0 = model0.reference(x)
    assert out0.shape == (N, m_dim)
    assert jnp.allclose(out0, ref0, atol=5e-3, rtol=5e-3)

    print("KERNEL_OK")
</pallas_src>

<mosaic_0001>
module attributes {stable_mosaic.version = 11 : i64} {
  func.func @_resident_kernel(%arg0: i32, %arg1: memref<16x128xbf16, #tpu.memory_space<vmem>>, %arg2: memref<128x128xbf16, #tpu.memory_space<vmem>>, %arg3: memref<2x128x128xbf16, #tpu.memory_space<vmem>>, %arg4: memref<2x128x128xbf16, #tpu.memory_space<vmem>>, %arg5: memref<16x128xf32, #tpu.memory_space<vmem>>) attributes {dimension_semantics = [#tpu.dimension_semantics<parallel>], iteration_bounds = array<i64: 1>, scalar_prefetch = 0 : i64, scratch_operands = 0 : i64, tpu.core_type = #tpu.core_type<tc>, window_params = [{transform_indices = @transform_0, window_bounds = array<i64: 16, 128>}, {pipeline_mode = #tpu.pipeline_mode<synchronous>, transform_indices = @transform_1, window_bounds = array<i64: 128, 128>}, {pipeline_mode = #tpu.pipeline_mode<synchronous>, transform_indices = @transform_2, window_bounds = array<i64: 2, 128, 128>}, {pipeline_mode = #tpu.pipeline_mode<synchronous>, transform_indices = @transform_3, window_bounds = array<i64: 2, 128, 128>}, {transform_indices = @transform_4, window_bounds = array<i64: 16, 128>}]} {
    %c0 = arith.constant 0 : index
    %c0_0 = arith.constant 0 : index
    %0 = vector.load %arg1[%c0, %c0_0] : memref<16x128xbf16, #tpu.memory_space<vmem>>, vector<16x128xbf16>
    %c0_1 = arith.constant 0 : index
    %c0_2 = arith.constant 0 : index
    %1 = vector.load %arg2[%c0_1, %c0_2] : memref<128x128xbf16, #tpu.memory_space<vmem>>, vector<128x128xbf16>
    %cst = arith.constant dense<0.000000e+00> : vector<16x128xf32>
    %2 = tpu.matmul %0, %1, %cst {dimension_numbers = #tpu.dot_dimension_numbers<[1], [0], [0], [1], [0, 0, 1, 1], [], []>} : vector<16x128xbf16>, vector<128x128xbf16>, vector<16x128xf32> -> vector<16x128xf32>
    %cst_3 = arith.constant 0.000000e+00 : f32
    %3 = vector.broadcast %cst_3 : f32 to vector<16x128xf32>
    %4 = arith.maximumf %2, %3 : vector<16x128xf32>
    %c0_i32 = arith.constant 0 : i32
    %5 = arith.truncf %4 : vector<16x128xf32> to vector<16x128xbf16>
    %6 = arith.index_cast %c0_i32 : i32 to index
    %c0_4 = arith.constant 0 : index
    %c0_5 = arith.constant 0 : index
    %7 = vector.load %arg3[%6, %c0_4, %c0_5] : memref<2x128x128xbf16, #tpu.memory_space<vmem>>, vector<1x128x128xbf16>
    %8 = vector.shape_cast %7 : vector<1x128x128xbf16> to vector<128x128xbf16>
    %cst_6 = arith.constant dense<0.000000e+00> : vector<16x128xf32>
    %9 = tpu.matmul %5, %8, %cst_6 {dimension_numbers = #tpu.dot_dimension_numbers<[1], [0], [0], [1], [0, 0, 1, 1], [], []>} : vector<16x128xbf16>, vector<128x128xbf16>, vector<16x128xf32> -> vector<16x128xf32>
    %cst_7 = arith.constant 0.000000e+00 : f32
    %10 = vector.broadcast %cst_7 : f32 to vector<16x128xf32>
    %11 = arith.maximumf %9, %10 : vector<16x128xf32>
    %12 = arith.truncf %11 : vector<16x128xf32> to vector<16x128xbf16>
    %13 = arith.index_cast %c0_i32 : i32 to index
    %c0_8 = arith.constant 0 : index
    %c0_9 = arith.constant 0 : index
    %14 = vector.load %arg4[%13, %c0_8, %c0_9] : memref<2x128x128xbf16, #tpu.memory_space<vmem>>, vector<1x128x128xbf16>
    %15 = vector.shape_cast %14 : vector<1x128x128xbf16> to vector<128x128xbf16>
    %cst_10 = arith.constant dense<0.000000e+00> : vector<16x128xf32>
    %16 = tpu.matmul %12, %15, %cst_10 {dimension_numbers = #tpu.dot_dimension_numbers<[1], [0], [0], [1], [0, 0, 1, 1], [], []>} : vector<16x128xbf16>, vector<128x128xbf16>, vector<16x128xf32> -> vector<16x128xf32>
    %cst_11 = arith.constant 0.000000e+00 : f32
    %17 = vector.broadcast %cst_11 : f32 to vector<16x128xf32>
    %18 = arith.maximumf %16, %17 : vector<16x128xf32>
    %19 = arith.addf %4, %18 : vector<16x128xf32>
    %c1_i32 = arith.constant 1 : i32
    %20 = arith.truncf %19 : vector<16x128xf32> to vector<16x128xbf16>
    %21 = arith.index_cast %c1_i32 : i32 to index
    %c0_12 = arith.constant 0 : index
    %c0_13 = arith.constant 0 : index
    %22 = vector.load %arg3[%21, %c0_12, %c0_13] : memref<2x128x128xbf16, #tpu.memory_space<vmem>>, vector<1x128x128xbf16>
    %23 = vector.shape_cast %22 : vector<1x128x128xbf16> to vector<128x128xbf16>
    %cst_14 = arith.constant dense<0.000000e+00> : vector<16x128xf32>
    %24 = tpu.matmul %20, %23, %cst_14 {dimension_numbers = #tpu.dot_dimension_numbers<[1], [0], [0], [1], [0, 0, 1, 1], [], []>} : vector<16x128xbf16>, vector<128x128xbf16>, vector<16x128xf32> -> vector<16x128xf32>
    %cst_15 = arith.constant 0.000000e+00 : f32
    %25 = vector.broadcast %cst_15 : f32 to vector<16x128xf32>
    %26 = arith.maximumf %24, %25 : vector<16x128xf32>
    %27 = arith.truncf %26 : vector<16x128xf32> to vector<16x128xbf16>
    %28 = arith.index_cast %c1_i32 : i32 to index
    %c0_16 = arith.constant 0 : index
    %c0_17 = arith.constant 0 : index
    %29 = vector.load %arg4[%28, %c0_16, %c0_17] : memref<2x128x128xbf16, #tpu.memory_space<vmem>>, vector<1x128x128xbf16>
    %30 = vector.shape_cast %29 : vector<1x128x128xbf16> to vector<128x128xbf16>
    %cst_18 = arith.constant dense<0.000000e+00> : vector<16x128xf32>
    %31 = tpu.matmul %27, %30, %cst_18 {dimension_numbers = #tpu.dot_dimension_numbers<[1], [0], [0], [1], [0, 0, 1, 1], [], []>} : vector<16x128xbf16>, vector<128x128xbf16>, vector<16x128xf32> -> vector<16x128xf32>
    %cst_19 = arith.constant 0.000000e+00 : f32
    %32 = vector.broadcast %cst_19 : f32 to vector<16x128xf32>
    %33 = arith.maximumf %31, %32 : vector<16x128xf32>
    %34 = arith.addf %19, %33 : vector<16x128xf32>
    %c2_i32 = arith.constant 2 : i32
    %c0_20 = arith.constant 0 : index
    %c0_21 = arith.constant 0 : index
    %35 = vector.load %arg5[%c0_20, %c0_21] : memref<16x128xf32, #tpu.memory_space<vmem>>, vector<16x128xf32>
    tpu.vector_store %arg5[%c0_20, %c0_21], %34 {strides = array<i32>} : memref<16x128xf32, #tpu.memory_space<vmem>>, vector<16x128xf32>,
    return
  }
  func.func @transform_0(%arg0: i32) -> (i32, i32) {
    %c0_i32 = arith.constant 0 : i32
    %c0_i32_0 = arith.constant 0 : i32
    return %arg0, %c0_i32 : i32, i32
  }
  func.func @transform_1(%arg0: i32) -> (i32, i32) {
    %c0_i32 = arith.constant 0 : i32
    %c0_i32_0 = arith.constant 0 : i32
    %c0_i32_1 = arith.constant 0 : i32
    return %c0_i32, %c0_i32_0 : i32, i32
  }
  func.func @transform_2(%arg0: i32) -> (i32, i32, i32) {
    %c0_i32 = arith.constant 0 : i32
    %c0_i32_0 = arith.constant 0 : i32
    %c0_i32_1 = arith.constant 0 : i32
    %c0_i32_2 = arith.constant 0 : i32
    return %c0_i32, %c0_i32_0, %c0_i32_1 : i32, i32, i32
  }
  func.func @transform_3(%arg0: i32) -> (i32, i32, i32) {
    %c0_i32 = arith.constant 0 : i32
    %c0_i32_0 = arith.constant 0 : i32
    %c0_i32_1 = arith.constant 0 : i32
    %c0_i32_2 = arith.constant 0 : i32
    return %c0_i32, %c0_i32_0, %c0_i32_1 : i32, i32, i32
  }
  func.func @transform_4(%arg0: i32) -> (i32, i32) {
    %c0_i32 = arith.constant 0 : i32
    %c0_i32_0 = arith.constant 0 : i32
    return %arg0, %c0_i32 : i32, i32
  }
}

</mosaic_0001>

<llo_original>
// kernel: tpu_custom_call.1
$region0: #{tpu_custom_call.1}
  #allocation0 [shape = 'u32[]', space=smem, size = 0x4, offset = 0x4, fixed_abs, tag = 'smem constant byte address 0x4 - core index']
  #allocation1 [shape = 'u32[144,128]{1,0:T(1,128)}', space=vmem, size = 0x12000, scoped, tag = 'internal scratch']
  %s0 = inlined_call_operand.hbm [shape: bf16[16,128], index: 0, kind: input, shape index: {}]
  %s1 = inlined_call_operand.hbm [shape: bf16[128,128], index: 1, kind: input, shape index: {}]
  %s2 = inlined_call_operand.hbm [shape: bf16[2,128,128], index: 2, kind: input, shape index: {}]
  %s3 = inlined_call_operand.hbm [shape: bf16[2,128,128], index: 3, kind: input, shape index: {}]
  %s4 = inlined_call_operand.hbm [shape: f32[16,128], index: 4, kind: output, shape index: {}]
  %s5 = sld [smem:[#allocation0]]
  $region42: #{tpu_custom_call.1} parent=0
    _
  %s7 = ssub.s32 1, %s5
  %s8 = scalar_select 0, %s7, %s5
  $region1: #{tpu_custom_call.1} parent=0
    #allocation2 [shape = 'u8[4096]{0}', space=vmem, size = 0x1000, scoped, tag = 'input window, operand 0, single buffered']
    #allocation3 [shape = 's32[1]{0}', space=sflag, size = 0x4, scoped, tag = 'scoped memory for tpu_custom_call.1']
    #allocation4 [shape = 's32[1]{0}', space=sflag, size = 0x4, scoped, tag = 'scoped memory for tpu_custom_call.1']
    #allocation5 [shape = 'u8[32768]{0}', space=vmem, size = 0x8000, scoped, tag = 'input window, operand 1, single buffered']
    #allocation6 [shape = 's32[1]{0}', space=sflag, size = 0x4, scoped, tag = 'scoped memory for tpu_custom_call.1']
    #allocation7 [shape = 'u8[65536]{0}', space=vmem, size = 0x10000, scoped, tag = 'input window, operand 2, single buffered']
    #allocation8 [shape = 'u8[65536]{0}', space=vmem, size = 0x10000, scoped, tag = 'input window, operand 3, single buffered']
    #allocation9 [shape = 's32[1]{0}', space=sflag, size = 0x4, scoped, tag = 'scoped memory for tpu_custom_call.1']
    #allocation10 [shape = 'u8[8192]{0}', space=vmem, size = 0x2000, scoped, tag = 'output window, operand 0, single buffered']
    %9 = vsyncpa [#allocation3], 0
    %10 = vsyncpa [#allocation6], 0
    %11 = vsyncpa [#allocation9], 0
    %12 = vsyncpa [#allocation4], 0
    // Predicated region
    $region2: #{tpu_custom_call.1} parent=1 // pred_check
      _
    $region3: #{tpu_custom_call.1} parent=1 // pred_check_branch
      %14 = sbr.rel (0) target = $region5
    $region4: #{tpu_custom_call.1} parent=1 // pred_region
      %s16 = ssub.s32 128, 128
      %17 = vsyncadd [#allocation3], %s16
      %s18 = sshll.u32 [#allocation2], 4
      %s19 = int_to_ptr.vmem [resolvable:$true] %s18
      %24 = dma.hbm_to_vmem [thread:$0]  %s0, 128, %s19, [#allocation3], 64, 64, 4
    $region5: #{tpu_custom_call.1} parent=1 // pred_fallthru
      _
    // Predicated region
    $region6: #{tpu_custom_call.1} parent=1 // pred_check
      _
    $region7: #{tpu_custom_call.1} parent=1 // pred_check_branch
      %26 = sbr.rel (0) target = $region9
    $region8: #{tpu_custom_call.1} parent=1 // pred_region
      %s28 = ssub.s32 1024, 1024
      %29 = vsyncadd [#allocation6], %s28
      %s30 = sshll.u32 [#allocation5], 4
      %s31 = int_to_ptr.vmem [resolvable:$true] %s30
      %36 = dma.hbm_to_vmem [thread:$0]  %s1, 1024, %s31, [#allocation6], 64, 64, 4
    $region9: #{tpu_custom_call.1} parent=1 // pred_fallthru
      _
    // Predicated region
    $region10: #{tpu_custom_call.1} parent=1 // pred_check
      _
    $region11: #{tpu_custom_call.1} parent=1 // pred_check_branch
      %38 = sbr.rel (0) target = $region13
    $region12: #{tpu_custom_call.1} parent=1 // pred_region
      %s40 = ssub.s32 2048, 2048
      %41 = vsyncadd [#allocation6], %s40
      %s42 = sshll.u32 [#allocation7], 4
      %s43 = int_to_ptr.vmem [resolvable:$true] %s42
      %48 = dma.hbm_to_vmem [thread:$0]  %s2, 2048, %s43, [#allocation6], 64, 64, 4
    $region13: #{tpu_custom_call.1} parent=1 // pred_fallthru
      _
    // Predicated region
    $region14: #{tpu_custom_call.1} parent=1 // pred_check
      _
    $region15: #{tpu_custom_call.1} parent=1 // pred_check_branch
      %50 = sbr.rel (0) target = $region17
    $region16: #{tpu_custom_call.1} parent=1 // pred_region
      %s52 = ssub.s32 2048, 2048
      %53 = vsyncadd [#allocation9], %s52
      %s54 = sshll.u32 [#allocation8], 4
      %s55 = int_to_ptr.vmem [resolvable:$true] %s54
      %60 = dma.hbm_to_vmem [thread:$0]  %s3, 2048, %s55, [#allocation9], 64, 64, 4
    $region17: #{tpu_custom_call.1} parent=1 // pred_fallthru
      _
    // Predicated region
    $region18: #{tpu_custom_call.1} parent=1 // pred_check
      _
    $region19: #{tpu_custom_call.1} parent=1 // pred_check_branch
      %62 = sbr.rel (0) target = $region21
    $region20: #{tpu_custom_call.1} parent=1 // pred_region
      %63 = dma.done [#allocation3], 128
    $region21: #{tpu_custom_call.1} parent=1 // pred_fallthru
      _
    // Predicated region
    $region22: #{tpu_custom_call.1} parent=1 // pred_check
      _
    $region23: #{tpu_custom_call.1} parent=1 // pred_check_branch
      %65 = sbr.rel (0) target = $region25
    $region24: #{tpu_custom_call.1} parent=1 // pred_region
      %66 = dma.done [#allocation6], 1024
    $region25: #{tpu_custom_call.1} parent=1 // pred_fallthru
      _
    // Predicated region
    $region26: #{tpu_custom_call.1} parent=1 // pred_check
      _
    $region27: #{tpu_custom_call.1} parent=1 // pred_check_branch
      %68 = sbr.rel (0) target = $region29
    $region28: #{tpu_custom_call.1} parent=1 // pred_region
      %69 = dma.done [#allocation6], 2048
    $region29: #{tpu_custom_call.1} parent=1 // pred_fallthru
      _
    // Predicated region
    $region30: #{tpu_custom_call.1} parent=1 // pred_check
      _
    $region31: #{tpu_custom_call.1} parent=1 // pred_check_branch
      %71 = sbr.rel (0) target = $region33
    $region32: #{tpu_custom_call.1} parent=1 // pred_region
      %72 = dma.done [#allocation9], 2048
    $region33: #{tpu_custom_call.1} parent=1 // pred_fallthru
      _
    %v74 = vld [vmem:[#allocation2] sm:$0xf]
    %v75 = vld [vmem:[#allocation2 + $0x4] sm:$0xf]
    %v76 = vld [vmem:[#allocation5] sm:$0xf]
    %v77 = vld [vmem:[#allocation5 + $0x4] sm:$0xf]
    %v78 = vld [vmem:[#allocation5 + $0x8] sm:$0xf]
    %v79 = vld [vmem:[#allocation5 + $0xc] sm:$0xf]
    %v80 = vld [vmem:[#allocation5 + $0x10] sm:$0xf]
    %v81 = vld [vmem:[#allocation5 + $0x14] sm:$0xf]
    %v82 = vld [vmem:[#allocation5 + $0x18] sm:$0xf]
    %v83 = vld [vmem:[#allocation5 + $0x1c] sm:$0xf]
    %v84 = vld [vmem:[#allocation5 + $0x20] sm:$0xf]
    %v85 = vld [vmem:[#allocation5 + $0x24] sm:$0xf]
    %v86 = vld [vmem:[#allocation5 + $0x28] sm:$0xf]
    %v87 = vld [vmem:[#allocation5 + $0x2c] sm:$0xf]
    %v88 = vld [vmem:[#allocation5 + $0x30] sm:$0xf]
    %v89 = vld [vmem:[#allocation5 + $0x34] sm:$0xf]
    %v90 = vld [vmem:[#allocation5 + $0x38] sm:$0xf]
    %v91 = vld [vmem:[#allocation5 + $0x3c] sm:$0xf]
    %v94 = vunpack.c.l.b16 %v74
    %v95 = vunpack.c.l.b16 %v75
    %v96 = vpack.c.b16 %v95, %v94
    %v114 = vunpack.c.l.b16 %v76
    %v115 = vunpack.c.l.b16 %v77
    %v116 = vunpack.c.l.b16 %v78
    %v117 = vunpack.c.l.b16 %v79
    %v118 = vunpack.c.l.b16 %v80
    %v119 = vunpack.c.l.b16 %v81
    %v120 = vunpack.c.l.b16 %v82
    %v121 = vunpack.c.l.b16 %v83
    %v122 = vunpack.c.l.b16 %v84
    %v123 = vunpack.c.l.b16 %v85
    %v124 = vunpack.c.l.b16 %v86
    %v125 = vunpack.c.l.b16 %v87
    %v126 = vunpack.c.l.b16 %v88
    %v127 = vunpack.c.l.b16 %v89
    %v128 = vunpack.c.l.b16 %v90
    %v129 = vunpack.c.l.b16 %v91
    %v130 = vpack.c.b16 %v115, %v114
    %v131 = vpack.c.b16 %v117, %v116
    %v132 = vpack.c.b16 %v119, %v118
    %v133 = vpack.c.b16 %v121, %v120
    %v134 = vpack.c.b16 %v123, %v122
    %v135 = vpack.c.b16 %v125, %v124
    %v136 = vpack.c.b16 %v127, %v126
    %v137 = vpack.c.b16 %v129, %v128
    %146 = vmatprep.subr.bf16.mxu0 0
    %147 = vmatpush1.bf16.msra.mxu0 %v130
    %148 = vmatprep.subr.bf16.mxu0 0
    %149 = vmatpush1.bf16.msra.mxu0 %v131
    %150 = vmatprep.subr.bf16.mxu0 0
    %151 = vmatpush1.bf16.msra.mxu0 %v132
    %152 = vmatprep.subr.bf16.mxu0 0
    %153 = vmatpush1.bf16.msra.mxu0 %v133
    %154 = vmatprep.subr.bf16.mxu0 0
    %155 = vmatpush1.bf16.msra.mxu0 %v134
    %156 = vmatprep.subr.bf16.mxu0 0
    %157 = vmatpush1.bf16.msra.mxu0 %v135
    %158 = vmatprep.subr.bf16.mxu0 0
    %159 = vmatpush1.bf16.msra.mxu0 %v136
    %160 = vmatprep.subr.bf16.mxu0 0
    %161 = vmatpush1.bf16.msra.mxu0 %v137
    %162 = vmatprep.subr.bf16.mxu0 0
    %163 = vmatpush1.bf16.msra.mxu0 0
    %164 = vmatprep.subr.bf16.mxu0 0
    %165 = vmatpush1.bf16.msra.mxu0 0
    %166 = vmatprep.subr.bf16.mxu0 0
    %167 = vmatpush1.bf16.msra.mxu0 0
    %168 = vmatprep.subr.bf16.mxu0 0
    %169 = vmatpush1.bf16.msra.mxu0 0
    %170 = vmatprep.subr.bf16.mxu0 0
    %171 = vmatpush1.bf16.msra.mxu0 0
    %172 = vmatprep.subr.bf16.mxu0 0
    %173 = vmatpush1.bf16.msra.mxu0 0
    %174 = vmatprep.subr.bf16.mxu0 0
    %175 = vmatpush1.bf16.msra.mxu0 0
    %176 = vmatprep.subr.bf16.mxu0 0
    %177 = vmatpush1.bf16.msra.mxu0 0
    %178 = vmatprep.mubr.bf16.mxu0 0
    %179 = vmatmul.mubr.bf16.gmra.mrb[0].mxu0 %v96
    %v180 = vpop.f32.mrb[0].mxu0
    %v181 = vadd.f32 0.0, %v180
    %v182 = vpop.f32.mrb[0].mxu0
    %v183 = vpop.f32.mrb[0].mxu0
    %v184 = vadd.f32 0.0, %v183
    %v185 = vpop.f32.mrb[0].mxu0
    %186 = vdwg.mxu0
    %v187 = vmax.f32 %v181, 0.0
    %v188 = vmax.f32 %v184, 0.0
    %v189 = vpack.c.bf16 %v188, %v187
    %v190 = vld [vmem:[#allocation7] sm:$0xf]
    %v191 = vld [vmem:[#allocation7 + $0x4] sm:$0xf]
    %v192 = vld [vmem:[#allocation7 + $0x8] sm:$0xf]
    %v193 = vld [vmem:[#allocation7 + $0xc] sm:$0xf]
    %v194 = vld [vmem:[#allocation7 + $0x10] sm:$0xf]
    %v195 = vld [vmem:[#allocation7 + $0x14] sm:$0xf]
    %v196 = vld [vmem:[#allocation7 + $0x18] sm:$0xf]
    %v197 = vld [vmem:[#allocation7 + $0x1c] sm:$0xf]
    %v198 = vld [vmem:[#allocation7 + $0x20] sm:$0xf]
    %v199 = vld [vmem:[#allocation7 + $0x24] sm:$0xf]
    %v200 = vld [vmem:[#allocation7 + $0x28] sm:$0xf]
    %v201 = vld [vmem:[#allocation7 + $0x2c] sm:$0xf]
    %v202 = vld [vmem:[#allocation7 + $0x30] sm:$0xf]
    %v203 = vld [vmem:[#allocation7 + $0x34] sm:$0xf]
    %v204 = vld [vmem:[#allocation7 + $0x38] sm:$0xf]
    %v205 = vld [vmem:[#allocation7 + $0x3c] sm:$0xf]
    %v222 = vunpack.c.l.b16 %v190
    %v223 = vunpack.c.l.b16 %v191
    %v224 = vunpack.c.l.b16 %v192
    %v225 = vunpack.c.l.b16 %v193
    %v226 = vunpack.c.l.b16 %v194
    %v227 = vunpack.c.l.b16 %v195
    %v228 = vunpack.c.l.b16 %v196
    %v229 = vunpack.c.l.b16 %v197
    %v230 = vunpack.c.l.b16 %v198
    %v231 = vunpack.c.l.b16 %v199
    %v232 = vunpack.c.l.b16 %v200
    %v233 = vunpack.c.l.b16 %v201
    %v234 = vunpack.c.l.b16 %v202
    %v235 = vunpack.c.l.b16 %v203
    %v236 = vunpack.c.l.b16 %v204
    %v237 = vunpack.c.l.b16 %v205
    %v238 = vpack.c.b16 %v223, %v222
    %v239 = vpack.c.b16 %v225, %v224
    %v240 = vpack.c.b16 %v227, %v226
    %v241 = vpack.c.b16 %v229, %v228
    %v242 = vpack.c.b16 %v231, %v230
    %v243 = vpack.c.b16 %v233, %v232
    %v244 = vpack.c.b16 %v235, %v234
    %v245 = vpack.c.b16 %v237, %v236
    %254 = vmatprep.subr.bf16.mxu0 0
    %255 = vmatpush1.bf16.msra.mxu0 %v238
    %256 = vmatprep.subr.bf16.mxu0 0
    %257 = vmatpush1.bf16.msra.mxu0 %v239
    %258 = vmatprep.subr.bf16.mxu0 0
    %259 = vmatpush1.bf16.msra.mxu0 %v240
    %260 = vmatprep.subr.bf16.mxu0 0
    %261 = vmatpush1.bf16.msra.mxu0 %v241
    %262 = vmatprep.subr.bf16.mxu0 0
    %263 = vmatpush1.bf16.msra.mxu0 %v242
    %264 = vmatprep.subr.bf16.mxu0 0
    %265 = vmatpush1.bf16.msra.mxu0 %v243
    %266 = vmatprep.subr.bf16.mxu0 0
    %267 = vmatpush1.bf16.msra.mxu0 %v244
    %268 = vmatprep.subr.bf16.mxu0 0
    %269 = vmatpush1.bf16.msra.mxu0 %v245
    %270 = vmatprep.subr.bf16.mxu0 0
    %271 = vmatpush1.bf16.msra.mxu0 0
    %272 = vmatprep.subr.bf16.mxu0 0
    %273 = vmatpush1.bf16.msra.mxu0 0
    %274 = vmatprep.subr.bf16.mxu0 0
    %275 = vmatpush1.bf16.msra.mxu0 0
    %276 = vmatprep.subr.bf16.mxu0 0
    %277 = vmatpush1.bf16.msra.mxu0 0
    %278 = vmatprep.subr.bf16.mxu0 0
    %279 = vmatpush1.bf16.msra.mxu0 0
    %280 = vmatprep.subr.bf16.mxu0 0
    %281 = vmatpush1.bf16.msra.mxu0 0
    %282 = vmatprep.subr.bf16.mxu0 0
    %283 = vmatpush1.bf16.msra.mxu0 0
    %284 = vmatprep.subr.bf16.mxu0 0
    %285 = vmatpush1.bf16.msra.mxu0 0
    %286 = vmatprep.mubr.bf16.mxu0 0
    %287 = vmatmul.mubr.bf16.gmra.mrb[0].mxu0 %v189
    %v288 = vpop.f32.mrb[0].mxu0
    %v289 = vadd.f32 0.0, %v288
    %v290 = vpop.f32.mrb[0].mxu0
    %v291 = vpop.f32.mrb[0].mxu0
    %v292 = vadd.f32 0.0, %v291
    %v293 = vpop.f32.mrb[0].mxu0
    %294 = vdwg.mxu0
    %v295 = vmax.f32 %v289, 0.0
    %v296 = vmax.f32 %v292, 0.0
    %v297 = vpack.c.bf16 %v296, %v295
    %v298 = vld [vmem:[#allocation8] sm:$0xf]
    %v299 = vld [vmem:[#allocation8 + $0x4] sm:$0xf]
    %v300 = vld [vmem:[#allocation8 + $0x8] sm:$0xf]
    %v301 = vld [vmem:[#allocation8 + $0xc] sm:$0xf]
    %v302 = vld [vmem:[#allocation8 + $0x10] sm:$0xf]
    %v303 = vld [vmem:[#allocation8 + $0x14] sm:$0xf]
    %v304 = vld [vmem:[#allocation8 + $0x18] sm:$0xf]
    %v305 = vld [vmem:[#allocation8 + $0x1c] sm:$0xf]
    %v306 = vld [vmem:[#allocation8 + $0x20] sm:$0xf]
    %v307 = vld [vmem:[#allocation8 + $0x24] sm:$0xf]
    %v308 = vld [vmem:[#allocation8 + $0x28] sm:$0xf]
    %v309 = vld [vmem:[#allocation8 + $0x2c] sm:$0xf]
    %v310 = vld [vmem:[#allocation8 + $0x30] sm:$0xf]
    %v311 = vld [vmem:[#allocation8 + $0x34] sm:$0xf]
    %v312 = vld [vmem:[#allocation8 + $0x38] sm:$0xf]
    %v313 = vld [vmem:[#allocation8 + $0x3c] sm:$0xf]
    %v330 = vunpack.c.l.b16 %v298
    %v331 = vunpack.c.l.b16 %v299
    %v332 = vunpack.c.l.b16 %v300
    %v333 = vunpack.c.l.b16 %v301
    %v334 = vunpack.c.l.b16 %v302
    %v335 = vunpack.c.l.b16 %v303
    %v336 = vunpack.c.l.b16 %v304
    %v337 = vunpack.c.l.b16 %v305
    %v338 = vunpack.c.l.b16 %v306
    %v339 = vunpack.c.l.b16 %v307
    %v340 = vunpack.c.l.b16 %v308
    %v341 = vunpack.c.l.b16 %v309
    %v342 = vunpack.c.l.b16 %v310
    %v343 = vunpack.c.l.b16 %v311
    %v344 = vunpack.c.l.b16 %v312
    %v345 = vunpack.c.l.b16 %v313
    %v346 = vpack.c.b16 %v331, %v330
    %v347 = vpack.c.b16 %v333, %v332
    %v348 = vpack.c.b16 %v335, %v334
    %v349 = vpack.c.b16 %v337, %v336
    %v350 = vpack.c.b16 %v339, %v338
    %v351 = vpack.c.b16 %v341, %v340
    %v352 = vpack.c.b16 %v343, %v342
    %v353 = vpack.c.b16 %v345, %v344
    %362 = vmatprep.subr.bf16.mxu0 0
    %363 = vmatpush1.bf16.msra.mxu0 %v346
    %364 = vmatprep.subr.bf16.mxu0 0
    %365 = vmatpush1.bf16.msra.mxu0 %v347
    %366 = vmatprep.subr.bf16.mxu0 0
    %367 = vmatpush1.bf16.msra.mxu0 %v348
    %368 = vmatprep.subr.bf16.mxu0 0
    %369 = vmatpush1.bf16.msra.mxu0 %v349
    %370 = vmatprep.subr.bf16.mxu0 0
    %371 = vmatpush1.bf16.msra.mxu0 %v350
    %372 = vmatprep.subr.bf16.mxu0 0
    %373 = vmatpush1.bf16.msra.mxu0 %v351
    %374 = vmatprep.subr.bf16.mxu0 0
    %375 = vmatpush1.bf16.msra.mxu0 %v352
    %376 = vmatprep.subr.bf16.mxu0 0
    %377 = vmatpush1.bf16.msra.mxu0 %v353
    %378 = vmatprep.subr.bf16.mxu0 0
    %379 = vmatpush1.bf16.msra.mxu0 0
    %380 = vmatprep.subr.bf16.mxu0 0
    %381 = vmatpush1.bf16.msra.mxu0 0
    %382 = vmatprep.subr.bf16.mxu0 0
    %383 = vmatpush1.bf16.msra.mxu0 0
    %384 = vmatprep.subr.bf16.mxu0 0
    %385 = vmatpush1.bf16.msra.mxu0 0
    %386 = vmatprep.subr.bf16.mxu0 0
    %387 = vmatpush1.bf16.msra.mxu0 0
    %388 = vmatprep.subr.bf16.mxu0 0
    %389 = vmatpush1.bf16.msra.mxu0 0
    %390 = vmatprep.subr.bf16.mxu0 0
    %391 = vmatpush1.bf16.msra.mxu0 0
    %392 = vmatprep.subr.bf16.mxu0 0
    %393 = vmatpush1.bf16.msra.mxu0 0
    %394 = vmatprep.mubr.bf16.mxu0 0
    %395 = vmatmul.mubr.bf16.gmra.mrb[0].mxu0 %v297
    %v396 = vpop.f32.mrb[0].mxu0
    %v397 = vadd.f32 0.0, %v396
    %v398 = vpop.f32.mrb[0].mxu0
    %v399 = vpop.f32.mrb[0].mxu0
    %v400 = vadd.f32 0.0, %v399
    %v401 = vpop.f32.mrb[0].mxu0
    %402 = vdwg.mxu0
    %v403 = vmax.f32 %v397, 0.0
    %v404 = vmax.f32 %v400, 0.0
    %v405 = vadd.f32 %v187, %v403
    %v406 = vadd.f32 %v188, %v404
    %v407 = vpack.c.bf16 %v406, %v405
    %s408 = scalar_lea.vmem [#allocation7], 64
    %v409 = vld [vmem:[%s408] sm:$0xf]
    %v410 = vld [vmem:[%s408 + $0x4] sm:$0xf]
    %v411 = vld [vmem:[%s408 + $0x8] sm:$0xf]
    %v412 = vld [vmem:[%s408 + $0xc] sm:$0xf]
    %v413 = vld [vmem:[%s408 + $0x10] sm:$0xf]
    %v414 = vld [vmem:[%s408 + $0x14] sm:$0xf]
    %v415 = vld [vmem:[%s408 + $0x18] sm:$0xf]
    %v416 = vld [vmem:[%s408 + $0x1c] sm:$0xf]
    %v417 = vld [vmem:[%s408 + $0x20] sm:$0xf]
    %v418 = vld [vmem:[%s408 + $0x24] sm:$0xf]
    %v419 = vld [vmem:[%s408 + $0x28] sm:$0xf]
    %v420 = vld [vmem:[%s408 + $0x2c] sm:$0xf]
    %v421 = vld [vmem:[%s408 + $0x30] sm:$0xf]
    %v422 = vld [vmem:[%s408 + $0x34] sm:$0xf]
    %v423 = vld [vmem:[%s408 + $0x38] sm:$0xf]
    %v424 = vld [vmem:[%s408 + $0x3c] sm:$0xf]
    %v441 = vunpack.c.l.b16 %v409
    %v442 = vunpack.c.l.b16 %v410
    %v443 = vunpack.c.l.b16 %v411
    %v444 = vunpack.c.l.b16 %v412
    %v445 = vunpack.c.l.b16 %v413
    %v446 = vunpack.c.l.b16 %v414
    %v447 = vunpack.c.l.b16 %v415
    %v448 = vunpack.c.l.b16 %v416
    %v449 = vunpack.c.l.b16 %v417
    %v450 = vunpack.c.l.b16 %v418
    %v451 = vunpack.c.l.b16 %v419
    %v452 = vunpack.c.l.b16 %v420
    %v453 = vunpack.c.l.b16 %v421
    %v454 = vunpack.c.l.b16 %v422
    %v455 = vunpack.c.l.b16 %v423
    %v456 = vunpack.c.l.b16 %v424
    %v457 = vpack.c.b16 %v442, %v441
    %v458 = vpack.c.b16 %v444, %v443
    %v459 = vpack.c.b16 %v446, %v445
    %v460 = vpack.c.b16 %v448, %v447
    %v461 = vpack.c.b16 %v450, %v449
    %v462 = vpack.c.b16 %v452, %v451
    %v463 = vpack.c.b16 %v454, %v453
    %v464 = vpack.c.b16 %v456, %v455
    %473 = vmatprep.subr.bf16.mxu0 0
    %474 = vmatpush1.bf16.msra.mxu0 %v457
    %475 = vmatprep.subr.bf16.mxu0 0
    %476 = vmatpush1.bf16.msra.mxu0 %v458
    %477 = vmatprep.subr.bf16.mxu0 0
    %478 = vmatpush1.bf16.msra.mxu0 %v459
    %479 = vmatprep.subr.bf16.mxu0 0
    %480 = vmatpush1.bf16.msra.mxu0 %v460
    %481 = vmatprep.subr.bf16.mxu0 0
    %482 = vmatpush1.bf16.msra.mxu0 %v461
    %483 = vmatprep.subr.bf16.mxu0 0
    %484 = vmatpush1.bf16.msra.mxu0 %v462
    %485 = vmatprep.subr.bf16.mxu0 0
    %486 = vmatpush1.bf16.msra.mxu0 %v463
    %487 = vmatprep.subr.bf16.mxu0 0
    %488 = vmatpush1.bf16.msra.mxu0 %v464
    %489 = vmatprep.subr.bf16.mxu0 0
    %490 = vmatpush1.bf16.msra.mxu0 0
    %491 = vmatprep.subr.bf16.mxu0 0
    %492 = vmatpush1.bf16.msra.mxu0 0
    %493 = vmatprep.subr.bf16.mxu0 0
    %494 = vmatpush1.bf16.msra.mxu0 0
    %495 = vmatprep.subr.bf16.mxu0 0
    %496 = vmatpush1.bf16.msra.mxu0 0
    %497 = vmatprep.subr.bf16.mxu0 0
    %498 = vmatpush1.bf16.msra.mxu0 0
    %499 = vmatprep.subr.bf16.mxu0 0
    %500 = vmatpush1.bf16.msra.mxu0 0
    %501 = vmatprep.subr.bf16.mxu0 0
    %502 = vmatpush1.bf16.msra.mxu0 0
    %503 = vmatprep.subr.bf16.mxu0 0
    %504 = vmatpush1.bf16.msra.mxu0 0
    %505 = vmatprep.mubr.bf16.mxu0 0
    %506 = vmatmul.mubr.bf16.gmra.mrb[0].mxu0 %v407
    %v507 = vpop.f32.mrb[0].mxu0
    %v508 = vadd.f32 0.0, %v507
    %v509 = vpop.f32.mrb[0].mxu0
    %v510 = vpop.f32.mrb[0].mxu0
    %v511 = vadd.f32 0.0, %v510
    %v512 = vpop.f32.mrb[0].mxu0
    %513 = vdwg.mxu0
    %v514 = vmax.f32 %v508, 0.0
    %v515 = vmax.f32 %v511, 0.0
    %v516 = vpack.c.bf16 %v515, %v514
    %s517 = scalar_lea.vmem [#allocation8], 64
    %v518 = vld [vmem:[%s517] sm:$0xf]
    %v519 = vld [vmem:[%s517 + $0x4] sm:$0xf]
    %v520 = vld [vmem:[%s517 + $0x8] sm:$0xf]
    %v521 = vld [vmem:[%s517 + $0xc] sm:$0xf]
    %v522 = vld [vmem:[%s517 + $0x10] sm:$0xf]
    %v523 = vld [vmem:[%s517 + $0x14] sm:$0xf]
    %v524 = vld [vmem:[%s517 + $0x18] sm:$0xf]
    %v525 = vld [vmem:[%s517 + $0x1c] sm:$0xf]
    %v526 = vld [vmem:[%s517 + $0x20] sm:$0xf]
    %v527 = vld [vmem:[%s517 + $0x24] sm:$0xf]
    %v528 = vld [vmem:[%s517 + $0x28] sm:$0xf]
    %v529 = vld [vmem:[%s517 + $0x2c] sm:$0xf]
    %v530 = vld [vmem:[%s517 + $0x30] sm:$0xf]
    %v531 = vld [vmem:[%s517 + $0x34] sm:$0xf]
    %v532 = vld [vmem:[%s517 + $0x38] sm:$0xf]
    %v533 = vld [vmem:[%s517 + $0x3c] sm:$0xf]
    %v550 = vunpack.c.l.b16 %v518
    %v551 = vunpack.c.l.b16 %v519
    %v552 = vunpack.c.l.b16 %v520
    %v553 = vunpack.c.l.b16 %v521
    %v554 = vunpack.c.l.b16 %v522
    %v555 = vunpack.c.l.b16 %v523
    %v556 = vunpack.c.l.b16 %v524
    %v557 = vunpack.c.l.b16 %v525
    %v558 = vunpack.c.l.b16 %v526
    %v559 = vunpack.c.l.b16 %v527
    %v560 = vunpack.c.l.b16 %v528
    %v561 = vunpack.c.l.b16 %v529
    %v562 = vunpack.c.l.b16 %v530
    %v563 = vunpack.c.l.b16 %v531
    %v564 = vunpack.c.l.b16 %v532
    %v565 = vunpack.c.l.b16 %v533
    %v566 = vpack.c.b16 %v551, %v550
    %v567 = vpack.c.b16 %v553, %v552
    %v568 = vpack.c.b16 %v555, %v554
    %v569 = vpack.c.b16 %v557, %v556
    %v570 = vpack.c.b16 %v559, %v558
    %v571 = vpack.c.b16 %v561, %v560
    %v572 = vpack.c.b16 %v563, %v562
    %v573 = vpack.c.b16 %v565, %v564
    %582 = vmatprep.subr.bf16.mxu0 0
    %583 = vmatpush1.bf16.msra.mxu0 %v566
    %584 = vmatprep.subr.bf16.mxu0 0
    %585 = vmatpush1.bf16.msra.mxu0 %v567
    %586 = vmatprep.subr.bf16.mxu0 0
    %587 = vmatpush1.bf16.msra.mxu0 %v568
    %588 = vmatprep.subr.bf16.mxu0 0
    %589 = vmatpush1.bf16.msra.mxu0 %v569
    %590 = vmatprep.subr.bf16.mxu0 0
    %591 = vmatpush1.bf16.msra.mxu0 %v570
    %592 = vmatprep.subr.bf16.mxu0 0
    %593 = vmatpush1.bf16.msra.mxu0 %v571
    %594 = vmatprep.subr.bf16.mxu0 0
    %595 = vmatpush1.bf16.msra.mxu0 %v572
    %596 = vmatprep.subr.bf16.mxu0 0
    %597 = vmatpush1.bf16.msra.mxu0 %v573
    %598 = vmatprep.subr.bf16.mxu0 0
    %599 = vmatpush1.bf16.msra.mxu0 0
    %600 = vmatprep.subr.bf16.mxu0 0
    %601 = vmatpush1.bf16.msra.mxu0 0
    %602 = vmatprep.subr.bf16.mxu0 0
    %603 = vmatpush1.bf16.msra.mxu0 0
    %604 = vmatprep.subr.bf16.mxu0 0
    %605 = vmatpush1.bf16.msra.mxu0 0
    %606 = vmatprep.subr.bf16.mxu0 0
    %607 = vmatpush1.bf16.msra.mxu0 0
    %608 = vmatprep.subr.bf16.mxu0 0
    %609 = vmatpush1.bf16.msra.mxu0 0
    %610 = vmatprep.subr.bf16.mxu0 0
    %611 = vmatpush1.bf16.msra.mxu0 0
    %612 = vmatprep.subr.bf16.mxu0 0
    %613 = vmatpush1.bf16.msra.mxu0 0
    %614 = vmatprep.mubr.bf16.mxu0 0
    %615 = vmatmul.mubr.bf16.gmra.mrb[0].mxu0 %v516
    %v616 = vpop.f32.mrb[0].mxu0
    %v617 = vadd.f32 0.0, %v616
    %v618 = vpop.f32.mrb[0].mxu0
    %v619 = vpop.f32.mrb[0].mxu0
    %v620 = vadd.f32 0.0, %v619
    %v621 = vpop.f32.mrb[0].mxu0
    %622 = vdwg.mxu0
    %v623 = vmax.f32 %v617, 0.0
    %v624 = vmax.f32 %v620, 0.0
    %v625 = vadd.f32 %v405, %v623
    %v626 = vadd.f32 %v406, %v624
    %627 = vst [vmem:[#allocation10] sm:$0xff] %v625
    %628 = vst [vmem:[#allocation10 + $0x8] sm:$0xff] %v626
    // Predicated region
    $region34: #{tpu_custom_call.1} parent=1 // pred_check
      _
    $region35: #{tpu_custom_call.1} parent=1 // pred_check_branch
      %630 = sbr.rel (0) target = $region37
    $region36: #{tpu_custom_call.1} parent=1 // pred_region
      %s632 = ssub.s32 256, 256
      %633 = vsyncadd [#allocation4], %s632
      %s634 = sshll.u32 [#allocation10], 4
      %s635 = int_to_ptr.vmem [resolvable:$true] %s634
      %640 = dma.vmem_to_hbm [thread:$0]  %s635, 256, %s4, [#allocation4], 128, 128, 8
    $region37: #{tpu_custom_call.1} parent=1 // pred_fallthru
      _
    // Predicated region
    $region38: #{tpu_custom_call.1} parent=1 // pred_check
      _
    $region39: #{tpu_custom_call.1} parent=1 // pred_check_branch
      %642 = sbr.rel (0) target = $region41
    $region40: #{tpu_custom_call.1} parent=1 // pred_region
      %643 = dma.done [#allocation4], 256
    $region41: #{tpu_custom_call.1} parent=1 // pred_fallthru
      _
    %644 = vsyncpa [#allocation3], 1
    %645 = vsyncpa [#allocation6], 1
    %646 = vsyncpa [#allocation9], 1
    %647 = vsyncpa [#allocation4], 1

</llo_original>
